<compile_context>
chip_gen: v6e
topology: v6e:2x2x1
jax: 0.10.0
libtpu: 0.0.40
codegen_flags: <defaults>
</compile_context>

<pallas_src>
import functools

import jax
import jax.numpy as jnp
from jax.experimental import pallas as pl
from jax.experimental.pallas import tpu as pltpu


_VMEM_LIMIT_BYTES = 48 * 1024 * 1024   # headroom below v7x 64 MiB physical


# ----------------------------- kernel helpers ------------------------------ #

def _activation(h, kind):
    if kind == "relu":
        return jnp.maximum(h, 0.0)
    if kind == "log_softmax":
        m = jnp.max(h, axis=-1, keepdims=True)
        s = h - m
        return s - jnp.log(jnp.sum(jnp.exp(s), axis=-1, keepdims=True))
    return h


# ----------------------------- fused kernel -------------------------------- #

def fused_gcn_kernel(a_ref, x_ref, w1_ref, b1_ref, w2_ref, b2_ref,
                     w3_ref, b3_ref, w4_ref, b4_ref, o_ref):
    """Whole 4-layer GCN forward, fully VMEM-resident (small / toy graphs).

    conv_k(h) = A_hat @ (h @ Wk) + bk; the order of the two matmuls is chosen
    statically per layer so the dominant N x N matmul runs with the smaller
    feature width. The classifier weights arrive pre-padded to 128 columns
    (pad bias = -1e9) so the final store is lane-dense.
    """
    a = a_ref[...]

    def conv(h, w, b):
        f_in, f_out = w.shape
        if f_out <= f_in:   # project first: N x N matmul runs at width f_out
            hw = jnp.dot(h, w, preferred_element_type=jnp.float32).astype(jnp.bfloat16)
            return jnp.dot(a, hw, preferred_element_type=jnp.float32) + b
        ah = jnp.dot(a, h, preferred_element_type=jnp.float32).astype(jnp.bfloat16)
        return jnp.dot(ah, w, preferred_element_type=jnp.float32) + b

    h = x_ref[...]
    h = _activation(conv(h, w1_ref[...], b1_ref[...]), "relu").astype(jnp.bfloat16)
    # TODO(synk): F.dropout(p=0.3, training=...) is identity at inference -> omitted.
    h = _activation(conv(h, w2_ref[...], b2_ref[...]), "relu").astype(jnp.bfloat16)
    h = _activation(conv(h, w3_ref[...], b3_ref[...]), "relu").astype(jnp.bfloat16)
    logits = conv(h, w4_ref[...], b4_ref[...])      # (N, C_pad) f32, pad cols ~ -1e9
    o_ref[...] = _activation(logits, "log_softmax").astype(o_ref.dtype)


# ------------------------ row-blocked fallback kernel ----------------------- #

def gcn_layer_kernel(a_ref, x_ref, w_ref, b_ref, o_ref, *, activation, lin_first):
    """One GCNConv (+ fused activation) on a (tm, N) row block of A_hat.

    The X @ W projection is folded into the same kernel (recomputed per row
    block: X/W are small and this keeps the row axis embarrassingly parallel,
    avoiding a cross-step scratch-init hazard under megacore sharding).
    """
    if lin_first:
        rhs = jnp.dot(x_ref[...], w_ref[...],
                      preferred_element_type=jnp.float32).astype(jnp.bfloat16)
        h = jnp.dot(a_ref[...], rhs, preferred_element_type=jnp.float32) + b_ref[...]
    else:
        ah = jnp.dot(a_ref[...], x_ref[...],
                     preferred_element_type=jnp.float32).astype(jnp.bfloat16)
        h = jnp.dot(ah, w_ref[...], preferred_element_type=jnp.float32) + b_ref[...]
    o_ref[...] = _activation(h, activation).astype(o_ref.dtype)


def gcn_layer(a, x, w, b, *, tm, activation, out_dtype):
    n = a.shape[0]
    f_in = x.shape[1]
    f_out = w.shape[1]
    lin_first = f_out <= f_in
    kern = functools.partial(gcn_layer_kernel, activation=activation,
                             lin_first=lin_first)
    return pl.pallas_call(
        kern,
        out_shape=jax.ShapeDtypeStruct((n, f_out), out_dtype),
        grid=(pl.cdiv(n, tm),),
        in_specs=[pl.BlockSpec((tm, n), lambda i: (i, 0)),        # A row block
                  pl.BlockSpec((n, f_in), lambda i: (0, 0)),      # X resident
                  pl.BlockSpec((f_in, f_out), lambda i: (0, 0)),  # W resident
                  pl.BlockSpec((1, f_out), lambda i: (0, 0))],    # bias
        out_specs=pl.BlockSpec((tm, f_out), lambda i: (i, 0)),
        compiler_params=pltpu.CompilerParams(
            dimension_semantics=("parallel",),
            vmem_limit_bytes=_VMEM_LIMIT_BYTES),
    )(a, x, w, b)


# ------------------------------- wrappers ----------------------------------- #

def build_gcn_adjacency(edge_index, num_nodes):
    """Dense A_hat = D^-1/2 (A + I) D^-1/2, A[dst, src] += 1 per edge.

    Duplicate edges sum (same as PyG scatter-add message passing, which does
    not coalesce duplicates).
    """
    src, dst = edge_index[0], edge_index[1]
    adj = jnp.zeros((num_nodes, num_nodes), jnp.float32)
    adj = adj.at[dst, src].add(1.0)
    diag = jnp.diagonal(adj)
    adj = adj + jnp.diag(jnp.where(diag > 0.0, 0.0, 1.0))   # add missing self-loops
    deg = jnp.sum(adj, axis=1)
    dinv = jax.lax.rsqrt(jnp.maximum(deg, 1.0))
    return adj * dinv[:, None] * dinv[None, :]


def _pad_classifier(w4, b4, num_classes, c_pad):
    """Pad classifier to c_pad (=128k) output columns for a lane-dense store."""
    f_in = w4.shape[0]
    w4p = jnp.zeros((f_in, c_pad), w4.dtype).at[:, :num_classes].set(w4)
    b4p = jnp.full((1, c_pad), -1e9, b4.dtype).at[:, :num_classes].set(b4)
    return w4p, b4p


@functools.partial(jax.jit, static_argnames=("num_classes", "fuse", "tm"))
def gcn_forward(x, edge_index, batch, params, *, num_classes, fuse=True, tm=None):
    del batch  # unused by the reference forward (no pooling)
    n = x.shape[0]
    a = build_gcn_adjacency(edge_index, n).astype(jnp.bfloat16)
    h = x.astype(jnp.bfloat16)

    c_pad = ((num_classes + 127) // 128) * 128
    w4p, b4p = _pad_classifier(params["w4"], params["b4"], num_classes, c_pad)

    if fuse:
        # Everything (A, activations, weights) fits in one VMEM residency ->
        # single grid-less pallas_call, no inter-layer HBM round trips.
        out_p = pl.pallas_call(
            fused_gcn_kernel,
            out_shape=jax.ShapeDtypeStruct((n, c_pad), jnp.float32),
            compiler_params=pltpu.CompilerParams(
                vmem_limit_bytes=_VMEM_LIMIT_BYTES),
        )(a, h, params["w1"], params["b1"], params["w2"], params["b2"],
          params["w3"], params["b3"], w4p, b4p)
        return out_p[:, :num_classes]

    # Row-blocked per-layer fallback for graphs too large to keep resident.
    if tm is None:
        tm = n if n <= 256 else 256   # MXU-friendly row blocks; 2+ steps/TC for real N
    h = gcn_layer(a, h, params["w1"], params["b1"], tm=tm,
                  activation="relu", out_dtype=jnp.bfloat16)
    h = gcn_layer(a, h, params["w2"], params["b2"], tm=tm,
                  activation="relu", out_dtype=jnp.bfloat16)
    h = gcn_layer(a, h, params["w3"], params["b3"], tm=tm,
                  activation="relu", out_dtype=jnp.bfloat16)
    out_p = gcn_layer(a, h, w4p, b4p, tm=tm,
                      activation="log_softmax", out_dtype=jnp.float32)
    return out_p[:, :num_classes]


def gcn_forward_reference(x, edge_index, params, num_classes):
    """Pure-JAX f32 reference of the PyTorch forward (for validation)."""
    del num_classes
    a = build_gcn_adjacency(edge_index, x.shape[0])
    h = x
    for i in (1, 2, 3):
        w = params[f"w{i}"].astype(jnp.float32)
        h = jnp.maximum(a @ (h @ w) + params[f"b{i}"], 0.0)
    logits = a @ (h @ params["w4"].astype(jnp.float32)) + params["b4"]
    return jax.nn.log_softmax(logits, axis=1)


def init_params(key, in_channels, hidden_channels, num_classes):
    ks = jax.random.split(key, 8)

    def lin(k, fan_in, fan_out):
        bound = 1.0 / jnp.sqrt(float(fan_in))
        w = jax.random.uniform(k, (fan_in, fan_out), jnp.float32, -bound, bound)
        return w.astype(jnp.bfloat16)            # MXU operand dtype

    def bias(k, fan_in, fan_out):
        bound = 1.0 / jnp.sqrt(float(fan_in))
        return jax.random.uniform(k, (1, fan_out), jnp.float32, -bound, bound)

    return {
        "w1": lin(ks[0], in_channels, hidden_channels),
        "b1": bias(ks[1], in_channels, hidden_channels),
        "w2": lin(ks[2], hidden_channels, hidden_channels),
        "b2": bias(ks[3], hidden_channels, hidden_channels),
        "w3": lin(ks[4], hidden_channels, hidden_channels),
        "b3": bias(ks[5], hidden_channels, hidden_channels),
        "w4": lin(ks[6], hidden_channels, num_classes),
        "b4": bias(ks[7], hidden_channels, num_classes),
    }


if __name__ == "__main__":
    key = jax.random.PRNGKey(0)
    k_x, k_e, k_p = jax.random.split(key, 3)

    # Small shapes mirroring the module (num_features -> hidden x3 -> 2 classes)
    num_nodes = 64
    in_channels, hidden_channels, num_classes = 32, 64, 2
    num_edges = 256

    x = jax.random.normal(k_x, (num_nodes, in_channels), jnp.float32)
    edge_index = jax.random.randint(k_e, (2, num_edges), 0, num_nodes, jnp.int32)
    batch = jnp.zeros((num_nodes,), jnp.int32)   # unused, matches module signature

    params = init_params(k_p, in_channels, hidden_channels, num_classes)

    out_fused = jax.block_until_ready(
        gcn_forward(x, edge_index, batch, params, num_classes=num_classes, fuse=True))
    out_tiled = jax.block_until_ready(
        gcn_forward(x, edge_index, batch, params, num_classes=num_classes,
                    fuse=False, tm=num_nodes))
    out_ref = jax.block_until_ready(
        gcn_forward_reference(x, edge_index, params, num_classes))

    assert out_fused.shape == (num_nodes, num_classes)
    assert out_tiled.shape == (num_nodes, num_classes)

    # log_softmax rows must exponentiate-sum to 1
    row_sums = jnp.sum(jnp.exp(out_fused), axis=-1)
    assert bool(jnp.all(jnp.abs(row_sums - 1.0) < 1e-3))

    # bf16 Pallas paths vs f32 pure-JAX reference
    assert float(jnp.max(jnp.abs(out_fused - out_ref))) < 0.25
    assert float(jnp.max(jnp.abs(out_tiled - out_ref))) < 0.25

    print("KERNEL_OK")
</pallas_src>

<mosaic_0001>
module attributes {stable_mosaic.version = 11 : i64} {
  func.func private @main(%arg0: i32) attributes {dimension_semantics = [#tpu.dimension_semantics<core_parallel>], iteration_bounds = array<i64: 2>, tpu.core_type = #tpu.core_type<sc_scalar_subcore>, window_params = []} {
    return
  }
}

module attributes {stable_mosaic.version = 11 : i64} {
  func.func private @main(%arg0: i32) attributes {dimension_semantics = [#tpu.dimension_semantics<core_parallel>], iteration_bounds = array<i64: 2>, tpu.core_type = #tpu.core_type<sc_scalar_subcore>, window_params = []} {
    return
  }
}

module attributes {stable_mosaic.version = 11 : i64} {
  func.func @fused_gcn_kernel(%arg0: memref<64x64xbf16, #tpu.memory_space<vmem>>, %arg1: memref<64x32xbf16, #tpu.memory_space<vmem>>, %arg2: memref<32x64xbf16, #tpu.memory_space<vmem>>, %arg3: memref<1x64xf32, #tpu.memory_space<vmem>>, %arg4: memref<64x64xbf16, #tpu.memory_space<vmem>>, %arg5: memref<1x64xf32, #tpu.memory_space<vmem>>, %arg6: memref<64x64xbf16, #tpu.memory_space<vmem>>, %arg7: memref<1x64xf32, #tpu.memory_space<vmem>>, %arg8: memref<64x128xbf16, #tpu.memory_space<vmem>>, %arg9: memref<1x128xf32, #tpu.memory_space<vmem>>, %arg10: memref<64x128xf32, #tpu.memory_space<vmem>>) attributes {dimension_semantics = [], scalar_prefetch = 0 : i64, scratch_operands = 0 : i64, tpu.core_type = #tpu.core_type<tc>} {
    %c0 = arith.constant 0 : index
    %c0_0 = arith.constant 0 : index
    %0 = vector.load %arg0[%c0, %c0_0] : memref<64x64xbf16, #tpu.memory_space<vmem>>, vector<64x64xbf16>
    %c0_1 = arith.constant 0 : index
    %c0_2 = arith.constant 0 : index
    %1 = vector.load %arg1[%c0_1, %c0_2] : memref<64x32xbf16, #tpu.memory_space<vmem>>, vector<64x32xbf16>
    %c0_3 = arith.constant 0 : index
    %c0_4 = arith.constant 0 : index
    %2 = vector.load %arg2[%c0_3, %c0_4] : memref<32x64xbf16, #tpu.memory_space<vmem>>, vector<32x64xbf16>
    %c0_5 = arith.constant 0 : index
    %c0_6 = arith.constant 0 : index
    %3 = vector.load %arg3[%c0_5, %c0_6] : memref<1x64xf32, #tpu.memory_space<vmem>>, vector<1x64xf32>
    %cst = arith.constant dense<0.000000e+00> : vector<64x32xf32>
    %4 = tpu.matmul %0, %1, %cst {dimension_numbers = #tpu.dot_dimension_numbers<[1], [0], [0], [1], [0, 0, 1, 1], [], []>} : vector<64x64xbf16>, vector<64x32xbf16>, vector<64x32xf32> -> vector<64x32xf32>
    %5 = arith.truncf %4 : vector<64x32xf32> to vector<64x32xbf16>
    %cst_7 = arith.constant dense<0.000000e+00> : vector<64x64xf32>
    %6 = tpu.matmul %5, %2, %cst_7 {dimension_numbers = #tpu.dot_dimension_numbers<[1], [0], [0], [1], [0, 0, 1, 1], [], []>} : vector<64x32xbf16>, vector<32x64xbf16>, vector<64x64xf32> -> vector<64x64xf32>
    %7 = vector.broadcast %3 : vector<1x64xf32> to vector<64x64xf32>
    %8 = arith.addf %6, %7 : vector<64x64xf32>
    %cst_8 = arith.constant 0.000000e+00 : f32
    %9 = vector.broadcast %cst_8 : f32 to vector<64x64xf32>
    %10 = arith.maximumf %8, %9 : vector<64x64xf32>
    %11 = arith.truncf %10 : vector<64x64xf32> to vector<64x64xbf16>
    %c0_9 = arith.constant 0 : index
    %c0_10 = arith.constant 0 : index
    %12 = vector.load %arg4[%c0_9, %c0_10] : memref<64x64xbf16, #tpu.memory_space<vmem>>, vector<64x64xbf16>
    %c0_11 = arith.constant 0 : index
    %c0_12 = arith.constant 0 : index
    %13 = vector.load %arg5[%c0_11, %c0_12] : memref<1x64xf32, #tpu.memory_space<vmem>>, vector<1x64xf32>
    %cst_13 = arith.constant dense<0.000000e+00> : vector<64x64xf32>
    %14 = tpu.matmul %11, %12, %cst_13 {dimension_numbers = #tpu.dot_dimension_numbers<[1], [0], [0], [1], [0, 0, 1, 1], [], []>} : vector<64x64xbf16>, vector<64x64xbf16>, vector<64x64xf32> -> vector<64x64xf32>
    %15 = arith.truncf %14 : vector<64x64xf32> to vector<64x64xbf16>
    %cst_14 = arith.constant dense<0.000000e+00> : vector<64x64xf32>
    %16 = tpu.matmul %0, %15, %cst_14 {dimension_numbers = #tpu.dot_dimension_numbers<[1], [0], [0], [1], [0, 0, 1, 1], [], []>} : vector<64x64xbf16>, vector<64x64xbf16>, vector<64x64xf32> -> vector<64x64xf32>
    %17 = vector.broadcast %13 : vector<1x64xf32> to vector<64x64xf32>
    %18 = arith.addf %16, %17 : vector<64x64xf32>
    %cst_15 = arith.constant 0.000000e+00 : f32
    %19 = vector.broadcast %cst_15 : f32 to vector<64x64xf32>
    %20 = arith.maximumf %18, %19 : vector<64x64xf32>
    %21 = arith.truncf %20 : vector<64x64xf32> to vector<64x64xbf16>
    %c0_16 = arith.constant 0 : index
    %c0_17 = arith.constant 0 : index
    %22 = vector.load %arg6[%c0_16, %c0_17] : memref<64x64xbf16, #tpu.memory_space<vmem>>, vector<64x64xbf16>
    %c0_18 = arith.constant 0 : index
    %c0_19 = arith.constant 0 : index
    %23 = vector.load %arg7[%c0_18, %c0_19] : memref<1x64xf32, #tpu.memory_space<vmem>>, vector<1x64xf32>
    %cst_20 = arith.constant dense<0.000000e+00> : vector<64x64xf32>
    %24 = tpu.matmul %21, %22, %cst_20 {dimension_numbers = #tpu.dot_dimension_numbers<[1], [0], [0], [1], [0, 0, 1, 1], [], []>} : vector<64x64xbf16>, vector<64x64xbf16>, vector<64x64xf32> -> vector<64x64xf32>
    %25 = arith.truncf %24 : vector<64x64xf32> to vector<64x64xbf16>
    %cst_21 = arith.constant dense<0.000000e+00> : vector<64x64xf32>
    %26 = tpu.matmul %0, %25, %cst_21 {dimension_numbers = #tpu.dot_dimension_numbers<[1], [0], [0], [1], [0, 0, 1, 1], [], []>} : vector<64x64xbf16>, vector<64x64xbf16>, vector<64x64xf32> -> vector<64x64xf32>
    %27 = vector.broadcast %23 : vector<1x64xf32> to vector<64x64xf32>
    %28 = arith.addf %26, %27 : vector<64x64xf32>
    %cst_22 = arith.constant 0.000000e+00 : f32
    %29 = vector.broadcast %cst_22 : f32 to vector<64x64xf32>
    %30 = arith.maximumf %28, %29 : vector<64x64xf32>
    %31 = arith.truncf %30 : vector<64x64xf32> to vector<64x64xbf16>
    %c0_23 = arith.constant 0 : index
    %c0_24 = arith.constant 0 : index
    %32 = vector.load %arg8[%c0_23, %c0_24] : memref<64x128xbf16, #tpu.memory_space<vmem>>, vector<64x128xbf16>
    %c0_25 = arith.constant 0 : index
    %c0_26 = arith.constant 0 : index
    %33 = vector.load %arg9[%c0_25, %c0_26] : memref<1x128xf32, #tpu.memory_space<vmem>>, vector<1x128xf32>
    %cst_27 = arith.constant dense<0.000000e+00> : vector<64x64xf32>
    %34 = tpu.matmul %0, %31, %cst_27 {dimension_numbers = #tpu.dot_dimension_numbers<[1], [0], [0], [1], [0, 0, 1, 1], [], []>} : vector<64x64xbf16>, vector<64x64xbf16>, vector<64x64xf32> -> vector<64x64xf32>
    %35 = arith.truncf %34 : vector<64x64xf32> to vector<64x64xbf16>
    %cst_28 = arith.constant dense<0.000000e+00> : vector<64x128xf32>
    %36 = tpu.matmul %35, %32, %cst_28 {dimension_numbers = #tpu.dot_dimension_numbers<[1], [0], [0], [1], [0, 0, 1, 1], [], []>} : vector<64x64xbf16>, vector<64x128xbf16>, vector<64x128xf32> -> vector<64x128xf32>
    %37 = vector.broadcast %33 : vector<1x128xf32> to vector<64x128xf32>
    %38 = arith.addf %36, %37 : vector<64x128xf32>
    %cst_29 = arith.constant dense<0xFF800000> : vector<64xf32>
    %39 = vector.multi_reduction <maximumf>, %38, %cst_29 [1] : vector<64x128xf32> to vector<64xf32>
    %40 = vector.shape_cast %39 : vector<64xf32> to vector<64x1xf32>
    %41 = vector.broadcast %40 : vector<64x1xf32> to vector<64x128xf32>
    %42 = arith.subf %38, %41 : vector<64x128xf32>
    %43 = math.exp %42 : vector<64x128xf32>
    %cst_30 = arith.constant dense<0.000000e+00> : vector<64xf32>
    %44 = vector.multi_reduction <add>, %43, %cst_30 [1] : vector<64x128xf32> to vector<64xf32>
    %45 = vector.shape_cast %44 : vector<64xf32> to vector<64x1xf32>
    %46 = math.log %45 : vector<64x1xf32>
    %47 = vector.broadcast %46 : vector<64x1xf32> to vector<64x128xf32>
    %48 = arith.subf %42, %47 : vector<64x128xf32>
    %c0_31 = arith.constant 0 : index
    %c0_32 = arith.constant 0 : index
    %49 = vector.load %arg10[%c0_31, %c0_32] : memref<64x128xf32, #tpu.memory_space<vmem>>, vector<64x128xf32>
    tpu.vector_store %arg10[%c0_31, %c0_32], %48 {strides = array<i32>} : memref<64x128xf32, #tpu.memory_space<vmem>>, vector<64x128xf32>,
    return
  }
}

</mosaic_0001>

<llo_original>
// kernel: gcn_forward.1
$region0: #{gcn_forward.1}
  #allocation0 [shape = 'u32[]', space=smem, size = 0x4, offset = 0x4, fixed_abs, tag = 'smem constant byte address 0x4 - core index']
  #allocation1 [shape = 'u32[144,128]{1,0:T(1,128)}', space=vmem, size = 0x12000, scoped, tag = 'internal scratch']
  %s0 = inlined_call_operand.vmem [shape: bf16[64,64], index: 0, kind: input, shape index: {}]
  %s1 = inlined_call_operand.vmem [shape: bf16[64,32], index: 1, kind: input, shape index: {}]
  %s2 = inlined_call_operand.vmem [shape: bf16[32,64], index: 2, kind: input, shape index: {}]
  %s3 = inlined_call_operand.vmem [shape: f32[1,64], index: 3, kind: input, shape index: {}]
  %s4 = inlined_call_operand.vmem [shape: bf16[64,64], index: 4, kind: input, shape index: {}]
  %s5 = inlined_call_operand.vmem [shape: f32[1,64], index: 5, kind: input, shape index: {}]
  %s6 = inlined_call_operand.vmem [shape: bf16[64,64], index: 6, kind: input, shape index: {}]
  %s7 = inlined_call_operand.vmem [shape: f32[1,64], index: 7, kind: input, shape index: {}]
  %s8 = inlined_call_operand.vmem [shape: bf16[64,128], index: 8, kind: input, shape index: {}]
  %s9 = inlined_call_operand.vmem [shape: f32[1,128], index: 9, kind: input, shape index: {}]
  %s10 = inlined_call_operand.vmem [shape: f32[64,128], index: 10, kind: output, shape index: {}]
  %s11 = sld [smem:[#allocation0]]
  $region50: #{gcn_forward.1} parent=0
    _
  %s13 = ssub.s32 1, %s11
  %s14 = scalar_select 0, %s13, %s11
  // Predicated region
  $region2: #{gcn_forward.1} parent=0 // pred_check
    _
  $region3: #{gcn_forward.1} parent=0 // pred_check_branch
    %16 = sbr.rel (0) target = $region5
  $region4: #{gcn_forward.1} parent=0 // pred_region
    _
  $region5: #{gcn_forward.1} parent=0 // pred_fallthru
    _
  // Predicated region
  $region6: #{gcn_forward.1} parent=0 // pred_check
    _
  $region7: #{gcn_forward.1} parent=0 // pred_check_branch
    %18 = sbr.rel (0) target = $region9
  $region8: #{gcn_forward.1} parent=0 // pred_region
    _
  $region9: #{gcn_forward.1} parent=0 // pred_fallthru
    _
  // Predicated region
  $region10: #{gcn_forward.1} parent=0 // pred_check
    _
  $region11: #{gcn_forward.1} parent=0 // pred_check_branch
    %20 = sbr.rel (0) target = $region13
  $region12: #{gcn_forward.1} parent=0 // pred_region
    _
  $region13: #{gcn_forward.1} parent=0 // pred_fallthru
    _
  // Predicated region
  $region14: #{gcn_forward.1} parent=0 // pred_check
    _
  $region15: #{gcn_forward.1} parent=0 // pred_check_branch
    %22 = sbr.rel (0) target = $region17
  $region16: #{gcn_forward.1} parent=0 // pred_region
    _
  $region17: #{gcn_forward.1} parent=0 // pred_fallthru
    _
  // Predicated region
  $region18: #{gcn_forward.1} parent=0 // pred_check
    _
  $region19: #{gcn_forward.1} parent=0 // pred_check_branch
    %24 = sbr.rel (0) target = $region21
  $region20: #{gcn_forward.1} parent=0 // pred_region
    _
  $region21: #{gcn_forward.1} parent=0 // pred_fallthru
    _
  // Predicated region
  $region22: #{gcn_forward.1} parent=0 // pred_check
    _
  $region23: #{gcn_forward.1} parent=0 // pred_check_branch
    %26 = sbr.rel (0) target = $region25
  $region24: #{gcn_forward.1} parent=0 // pred_region
    _
  $region25: #{gcn_forward.1} parent=0 // pred_fallthru
    _
  // Predicated region
  $region26: #{gcn_forward.1} parent=0 // pred_check
    _
  $region27: #{gcn_forward.1} parent=0 // pred_check_branch
    %28 = sbr.rel (0) target = $region29
  $region28: #{gcn_forward.1} parent=0 // pred_region
    _
  $region29: #{gcn_forward.1} parent=0 // pred_fallthru
    _
  // Predicated region
  $region30: #{gcn_forward.1} parent=0 // pred_check
    _
  $region31: #{gcn_forward.1} parent=0 // pred_check_branch
    %30 = sbr.rel (0) target = $region33
  $region32: #{gcn_forward.1} parent=0 // pred_region
    _
  $region33: #{gcn_forward.1} parent=0 // pred_fallthru
    _
  // Predicated region
  $region34: #{gcn_forward.1} parent=0 // pred_check
    _
  $region35: #{gcn_forward.1} parent=0 // pred_check_branch
    %32 = sbr.rel (0) target = $region37
  $region36: #{gcn_forward.1} parent=0 // pred_region
    _
  $region37: #{gcn_forward.1} parent=0 // pred_fallthru
    _
  // Predicated region
  $region38: #{gcn_forward.1} parent=0 // pred_check
    _
  $region39: #{gcn_forward.1} parent=0 // pred_check_branch
    %34 = sbr.rel (0) target = $region41
  $region40: #{gcn_forward.1} parent=0 // pred_region
    _
  $region41: #{gcn_forward.1} parent=0 // pred_fallthru
    _
  %v36 = vld [vmem:[%s0] sm:$0xf]
  %v37 = vld [vmem:[%s0 + $0x4] sm:$0xf]
  %v38 = vld [vmem:[%s0 + $0x8] sm:$0xf]
  %v39 = vld [vmem:[%s0 + $0xc] sm:$0xf]
  %v40 = vld [vmem:[%s0 + $0x10] sm:$0xf]
  %v41 = vld [vmem:[%s0 + $0x14] sm:$0xf]
  %v42 = vld [vmem:[%s0 + $0x18] sm:$0xf]
  %v43 = vld [vmem:[%s0 + $0x1c] sm:$0xf]
  %v44 = vld [vmem:[%s1] sm:$0xf]
  %v45 = vld [vmem:[%s1 + $0x4] sm:$0xf]
  %v46 = vld [vmem:[%s1 + $0x8] sm:$0xf]
  %v47 = vld [vmem:[%s1 + $0xc] sm:$0xf]
  %v48 = vld [vmem:[%s1 + $0x10] sm:$0xf]
  %v49 = vld [vmem:[%s1 + $0x14] sm:$0xf]
  %v50 = vld [vmem:[%s1 + $0x18] sm:$0xf]
  %v51 = vld [vmem:[%s1 + $0x1c] sm:$0xf]
  %v52 = vld [vmem:[%s2] sm:$0xf]
  %v53 = vld [vmem:[%s2 + $0x4] sm:$0xf]
  %v54 = vld [vmem:[%s2 + $0x8] sm:$0xf]
  %v55 = vld [vmem:[%s2 + $0xc] sm:$0xf]
  %v56 = vld [vmem:[%s3] sm:$0x1]
  %v65 = vunpack.c.l.b16 %v36
  %v66 = vunpack.c.l.b16 %v37
  %v67 = vunpack.c.l.b16 %v38
  %v68 = vunpack.c.l.b16 %v39
  %v69 = vunpack.c.l.b16 %v40
  %v70 = vunpack.c.l.b16 %v41
  %v71 = vunpack.c.l.b16 %v42
  %v72 = vunpack.c.l.b16 %v43
  %v73 = vpack.c.b16 %v66, %v65
  %v74 = vpack.c.b16 %v68, %v67
  %v75 = vpack.c.b16 %v70, %v69
  %v76 = vpack.c.b16 %v72, %v71
  %v85 = vunpack.c.l.b16 %v44
  %v86 = vunpack.c.l.b16 %v45
  %v87 = vunpack.c.l.b16 %v46
  %v88 = vunpack.c.l.b16 %v47
  %v89 = vunpack.c.l.b16 %v48
  %v90 = vunpack.c.l.b16 %v49
  %v91 = vunpack.c.l.b16 %v50
  %v92 = vunpack.c.l.b16 %v51
  %v93 = vpack.c.b16 %v86, %v85
  %v94 = vpack.c.b16 %v88, %v87
  %v95 = vpack.c.b16 %v90, %v89
  %v96 = vpack.c.b16 %v92, %v91
  %vm101 = vcmask 523264
  %v103 = vsel %vm101, %v73, 0
  %v106 = vsel %vm101, %v74, 0
  %v109 = vsel %vm101, %v75, 0
  %v112 = vsel %vm101, %v76, 0
  %114 = vmatprep.subr.bf16.mxu0 0
  %115 = vmatpush1.bf16.msra.mxu0 0
  %116 = vmatprep.subr.bf16.mxu0 0
  %117 = vmatpush1.bf16.msra.mxu0 0
  %118 = vmatprep.subr.bf16.mxu0 0
  %119 = vmatpush1.bf16.msra.mxu0 0
  %120 = vmatprep.subr.bf16.mxu0 0
  %121 = vmatpush1.bf16.msra.mxu0 0
  %122 = vmatprep.subr.bf16.mxu0 0
  %123 = vmatpush1.bf16.msra.mxu0 %v96
  %124 = vmatprep.subr.bf16.mxu0 0
  %125 = vmatpush1.bf16.msra.mxu0 %v95
  %126 = vmatprep.subr.bf16.mxu0 0
  %127 = vmatpush1.bf16.msra.mxu0 %v94
  %128 = vmatprep.subr.bf16.mxu0 0
  %129 = vmatpush1.bf16.msra.mxu0 %v93
  %130 = vmatprep.subr.bf16.mxu0 0
  %131 = vmatpush2.bf16.msra.mxu0 0
  %132 = vmatprep.subr.bf16.mxu0 0
  %133 = vmatpush2.bf16.msra.mxu0 0
  %134 = vmatprep.subr.bf16.mxu0 0
  %135 = vmatpush2.bf16.msra.mxu0 0
  %136 = vmatprep.subr.bf16.mxu0 0
  %137 = vmatpush2.bf16.msra.mxu0 0
  %138 = vmatprep.subr.bf16.mxu0 0
  %139 = vmatpush2.bf16.msra.mxu0 0
  %140 = vmatprep.subr.bf16.mxu0 0
  %141 = vmatpush2.bf16.msra.mxu0 0
  %142 = vmatprep.subr.bf16.mxu0 0
  %143 = vmatpush2.bf16.msra.mxu0 0
  %144 = vmatprep.subr.bf16.mxu0 0
  %145 = vmatpush2.bf16.msra.mxu0 0
  %146 = vmatprep.mubr.bf16.mxu0 0
  %147 = vmatmul.mubr.bf16.gmra.mxu0 %v103
  %v148 = vpop.f32.mrf.mxu0
  %v149 = vadd.f32 0.0, %v148
  %v150 = vpop.f32.mrf.mxu0
  %v151 = vpop.f32.mrf.mxu0
  %v152 = vadd.f32 0.0, %v151
  %v153 = vpop.f32.mrf.mxu0
  %154 = vmatprep.mubr.bf16.mxu0 0
  %155 = vmatmul.mubr.bf16.gmra.mxu0 %v106
  %v156 = vpop.f32.mrf.mxu0
  %v157 = vadd.f32 0.0, %v156
  %v158 = vpop.f32.mrf.mxu0
  %v159 = vpop.f32.mrf.mxu0
  %v160 = vadd.f32 0.0, %v159
  %v161 = vpop.f32.mrf.mxu0
  %162 = vmatprep.mubr.bf16.mxu0 0
  %163 = vmatmul.mubr.bf16.gmra.mxu0 %v109
  %v164 = vpop.f32.mrf.mxu0
  %v165 = vadd.f32 0.0, %v164
  %v166 = vpop.f32.mrf.mxu0
  %v167 = vpop.f32.mrf.mxu0
  %v168 = vadd.f32 0.0, %v167
  %v169 = vpop.f32.mrf.mxu0
  %170 = vmatprep.mubr.bf16.mxu0 0
  %171 = vmatmul.mubr.bf16.gmra.mxu0 %v112
  %v172 = vpop.f32.mrf.mxu0
  %v173 = vadd.f32 0.0, %v172
  %v174 = vpop.f32.mrf.mxu0
  %v175 = vpop.f32.mrf.mxu0
  %v176 = vadd.f32 0.0, %v175
  %v177 = vpop.f32.mrf.mxu0
  %178 = vdwg.mxu0
  %v179 = vpack.c.bf16 %v152, %v149
  %v180 = vpack.c.bf16 %v160, %v157
  %v181 = vpack.c.bf16 %v168, %v165
  %v182 = vpack.c.bf16 %v176, %v173
  %v184 = vlaneseq
  %v185 = vshrl.u32 %v184, 7
  %v186 = vsub.s32 0, %v185
  %v187 = vrot.slane %v56, %v186
  %v193 = vunpack.c.l.b16 %v52
  %v194 = vunpack.c.l.b16 %v53
  %v195 = vunpack.c.l.b16 %v54
  %v196 = vunpack.c.l.b16 %v55
  %v197 = vpack.c.b16 %v194, %v193
  %v198 = vpack.c.b16 %v196, %v195
  %vm201 = vcmask 261120
  %v203 = vsel %vm201, %v179, 0
  %v206 = vsel %vm201, %v180, 0
  %v209 = vsel %vm201, %v181, 0
  %v212 = vsel %vm201, %v182, 0
  %214 = vmatprep.subr.bf16.mxu0 0
  %215 = vmatpush1.bf16.msra.mxu0 0
  %216 = vmatprep.subr.bf16.mxu0 0
  %217 = vmatpush1.bf16.msra.mxu0 0
  %218 = vmatprep.subr.bf16.mxu0 0
  %219 = vmatpush1.bf16.msra.mxu0 0
  %220 = vmatprep.subr.bf16.mxu0 0
  %221 = vmatpush1.bf16.msra.mxu0 0
  %222 = vmatprep.subr.bf16.mxu0 0
  %223 = vmatpush1.bf16.msra.mxu0 0
  %224 = vmatprep.subr.bf16.mxu0 0
  %225 = vmatpush1.bf16.msra.mxu0 0
  %226 = vmatprep.subr.bf16.mxu0 0
  %227 = vmatpush1.bf16.msra.mxu0 %v198
  %228 = vmatprep.subr.bf16.mxu0 0
  %229 = vmatpush1.bf16.msra.mxu0 %v197
  %230 = vmatprep.subr.bf16.mxu0 0
  %231 = vmatpush2.bf16.msra.mxu0 0
  %232 = vmatprep.subr.bf16.mxu0 0
  %233 = vmatpush2.bf16.msra.mxu0 0
  %234 = vmatprep.subr.bf16.mxu0 0
  %235 = vmatpush2.bf16.msra.mxu0 0
  %236 = vmatprep.subr.bf16.mxu0 0
  %237 = vmatpush2.bf16.msra.mxu0 0
  %238 = vmatprep.subr.bf16.mxu0 0
  %239 = vmatpush2.bf16.msra.mxu0 0
  %240 = vmatprep.subr.bf16.mxu0 0
  %241 = vmatpush2.bf16.msra.mxu0 0
  %242 = vmatprep.subr.bf16.mxu0 0
  %243 = vmatpush2.bf16.msra.mxu0 0
  %244 = vmatprep.subr.bf16.mxu0 0
  %245 = vmatpush2.bf16.msra.mxu0 0
  %246 = vmatprep.mubr.bf16.mxu0 0
  %247 = vmatmul.mubr.bf16.gmra.mxu0 %v203
  %v248 = vpop.f32.mrf.mxu0
  %v249 = vadd.f32 %v187, %v248
  %v250 = vpop.f32.mrf.mxu0
  %v251 = vpop.f32.mrf.mxu0
  %v252 = vadd.f32 %v187, %v251
  %v253 = vpop.f32.mrf.mxu0
  %254 = vmatprep.mubr.bf16.mxu0 0
  %255 = vmatmul.mubr.bf16.gmra.mxu0 %v206
  %v256 = vpop.f32.mrf.mxu0
  %v257 = vadd.f32 %v187, %v256
  %v258 = vpop.f32.mrf.mxu0
  %v259 = vpop.f32.mrf.mxu0
  %v260 = vadd.f32 %v187, %v259
  %v261 = vpop.f32.mrf.mxu0
  %262 = vmatprep.mubr.bf16.mxu0 0
  %263 = vmatmul.mubr.bf16.gmra.mxu0 %v209
  %v264 = vpop.f32.mrf.mxu0
  %v265 = vadd.f32 %v187, %v264
  %v266 = vpop.f32.mrf.mxu0
  %v267 = vpop.f32.mrf.mxu0
  %v268 = vadd.f32 %v187, %v267
  %v269 = vpop.f32.mrf.mxu0
  %270 = vmatprep.mubr.bf16.mxu0 0
  %271 = vmatmul.mubr.bf16.gmra.mxu0 %v212
  %v272 = vpop.f32.mrf.mxu0
  %v273 = vadd.f32 %v187, %v272
  %v274 = vpop.f32.mrf.mxu0
  %v275 = vpop.f32.mrf.mxu0
  %v276 = vadd.f32 %v187, %v275
  %v277 = vpop.f32.mrf.mxu0
  %278 = vdwg.mxu0
  %v279 = vmax.f32 %v249, 0.0
  %v280 = vmax.f32 %v252, 0.0
  %v281 = vmax.f32 %v257, 0.0
  %v282 = vmax.f32 %v260, 0.0
  %v283 = vmax.f32 %v265, 0.0
  %v284 = vmax.f32 %v268, 0.0
  %v285 = vmax.f32 %v273, 0.0
  %v286 = vmax.f32 %v276, 0.0
  %v287 = vpack.c.bf16 %v280, %v279
  %v288 = vpack.c.bf16 %v282, %v281
  %v289 = vpack.c.bf16 %v284, %v283
  %v290 = vpack.c.bf16 %v286, %v285
  %v291 = vld [vmem:[%s4] sm:$0xf]
  %v292 = vld [vmem:[%s4 + $0x4] sm:$0xf]
  %v293 = vld [vmem:[%s4 + $0x8] sm:$0xf]
  %v294 = vld [vmem:[%s4 + $0xc] sm:$0xf]
  %v295 = vld [vmem:[%s4 + $0x10] sm:$0xf]
  %v296 = vld [vmem:[%s4 + $0x14] sm:$0xf]
  %v297 = vld [vmem:[%s4 + $0x18] sm:$0xf]
  %v298 = vld [vmem:[%s4 + $0x1c] sm:$0xf]
  %v299 = vld [vmem:[%s5] sm:$0x1]
  %v308 = vunpack.c.l.b16 %v291
  %v309 = vunpack.c.l.b16 %v292
  %v310 = vunpack.c.l.b16 %v293
  %v311 = vunpack.c.l.b16 %v294
  %v312 = vunpack.c.l.b16 %v295
  %v313 = vunpack.c.l.b16 %v296
  %v314 = vunpack.c.l.b16 %v297
  %v315 = vunpack.c.l.b16 %v298
  %v316 = vpack.c.b16 %v309, %v308
  %v317 = vpack.c.b16 %v311, %v310
  %v318 = vpack.c.b16 %v313, %v312
  %v319 = vpack.c.b16 %v315, %v314
  %v325 = vsel %vm101, %v287, 0
  %v328 = vsel %vm101, %v288, 0
  %v331 = vsel %vm101, %v289, 0
  %v334 = vsel %vm101, %v290, 0
  %336 = vmatprep.subr.bf16.mxu0 0
  %337 = vmatpush1.bf16.msra.mxu0 0
  %338 = vmatprep.subr.bf16.mxu0 0
  %339 = vmatpush1.bf16.msra.mxu0 0
  %340 = vmatprep.subr.bf16.mxu0 0
  %341 = vmatpush1.bf16.msra.mxu0 0
  %342 = vmatprep.subr.bf16.mxu0 0
  %343 = vmatpush1.bf16.msra.mxu0 0
  %344 = vmatprep.subr.bf16.mxu0 0
  %345 = vmatpush1.bf16.msra.mxu0 %v319
  %346 = vmatprep.subr.bf16.mxu0 0
  %347 = vmatpush1.bf16.msra.mxu0 %v318
  %348 = vmatprep.subr.bf16.mxu0 0
  %349 = vmatpush1.bf16.msra.mxu0 %v317
  %350 = vmatprep.subr.bf16.mxu0 0
  %351 = vmatpush1.bf16.msra.mxu0 %v316
  %352 = vmatprep.subr.bf16.mxu0 0
  %353 = vmatpush2.bf16.msra.mxu0 0
  %354 = vmatprep.subr.bf16.mxu0 0
  %355 = vmatpush2.bf16.msra.mxu0 0
  %356 = vmatprep.subr.bf16.mxu0 0
  %357 = vmatpush2.bf16.msra.mxu0 0
  %358 = vmatprep.subr.bf16.mxu0 0
  %359 = vmatpush2.bf16.msra.mxu0 0
  %360 = vmatprep.subr.bf16.mxu0 0
  %361 = vmatpush2.bf16.msra.mxu0 0
  %362 = vmatprep.subr.bf16.mxu0 0
  %363 = vmatpush2.bf16.msra.mxu0 0
  %364 = vmatprep.subr.bf16.mxu0 0
  %365 = vmatpush2.bf16.msra.mxu0 0
  %366 = vmatprep.subr.bf16.mxu0 0
  %367 = vmatpush2.bf16.msra.mxu0 0
  %368 = vmatprep.mubr.bf16.mxu0 0
  %369 = vmatmul.mubr.bf16.gmra.mxu0 %v325
  %v370 = vpop.f32.mrf.mxu0
  %v371 = vadd.f32 0.0, %v370
  %v372 = vpop.f32.mrf.mxu0
  %v373 = vpop.f32.mrf.mxu0
  %v374 = vadd.f32 0.0, %v373
  %v375 = vpop.f32.mrf.mxu0
  %376 = vmatprep.mubr.bf16.mxu0 0
  %377 = vmatmul.mubr.bf16.gmra.mxu0 %v328
  %v378 = vpop.f32.mrf.mxu0
  %v379 = vadd.f32 0.0, %v378
  %v380 = vpop.f32.mrf.mxu0
  %v381 = vpop.f32.mrf.mxu0
  %v382 = vadd.f32 0.0, %v381
  %v383 = vpop.f32.mrf.mxu0
  %384 = vmatprep.mubr.bf16.mxu0 0
  %385 = vmatmul.mubr.bf16.gmra.mxu0 %v331
  %v386 = vpop.f32.mrf.mxu0
  %v387 = vadd.f32 0.0, %v386
  %v388 = vpop.f32.mrf.mxu0
  %v389 = vpop.f32.mrf.mxu0
  %v390 = vadd.f32 0.0, %v389
  %v391 = vpop.f32.mrf.mxu0
  %392 = vmatprep.mubr.bf16.mxu0 0
  %393 = vmatmul.mubr.bf16.gmra.mxu0 %v334
  %v394 = vpop.f32.mrf.mxu0
  %v395 = vadd.f32 0.0, %v394
  %v396 = vpop.f32.mrf.mxu0
  %v397 = vpop.f32.mrf.mxu0
  %v398 = vadd.f32 0.0, %v397
  %v399 = vpop.f32.mrf.mxu0
  %400 = vdwg.mxu0
  %v401 = vpack.c.bf16 %v374, %v371
  %v402 = vpack.c.bf16 %v382, %v379
  %v403 = vpack.c.bf16 %v390, %v387
  %v404 = vpack.c.bf16 %v398, %v395
  %v406 = vlaneseq
  %v407 = vshrl.u32 %v406, 7
  %v408 = vsub.s32 0, %v407
  %v409 = vrot.slane %v299, %v408
  %411 = vmatprep.subr.bf16.mxu0 0
  %412 = vmatpush1.bf16.msra.mxu0 0
  %413 = vmatprep.subr.bf16.mxu0 0
  %414 = vmatpush1.bf16.msra.mxu0 0
  %415 = vmatprep.subr.bf16.mxu0 0
  %416 = vmatpush1.bf16.msra.mxu0 0
  %417 = vmatprep.subr.bf16.mxu0 0
  %418 = vmatpush1.bf16.msra.mxu0 0
  %419 = vmatprep.subr.bf16.mxu0 0
  %420 = vmatpush1.bf16.msra.mxu0 %v404
  %421 = vmatprep.subr.bf16.mxu0 0
  %422 = vmatpush1.bf16.msra.mxu0 %v403
  %423 = vmatprep.subr.bf16.mxu0 0
  %424 = vmatpush1.bf16.msra.mxu0 %v402
  %425 = vmatprep.subr.bf16.mxu0 0
  %426 = vmatpush1.bf16.msra.mxu0 %v401
  %427 = vmatprep.subr.bf16.mxu0 0
  %428 = vmatpush2.bf16.msra.mxu0 0
  %429 = vmatprep.subr.bf16.mxu0 0
  %430 = vmatpush2.bf16.msra.mxu0 0
  %431 = vmatprep.subr.bf16.mxu0 0
  %432 = vmatpush2.bf16.msra.mxu0 0
  %433 = vmatprep.subr.bf16.mxu0 0
  %434 = vmatpush2.bf16.msra.mxu0 0
  %435 = vmatprep.subr.bf16.mxu0 0
  %436 = vmatpush2.bf16.msra.mxu0 0
  %437 = vmatprep.subr.bf16.mxu0 0
  %438 = vmatpush2.bf16.msra.mxu0 0
  %439 = vmatprep.subr.bf16.mxu0 0
  %440 = vmatpush2.bf16.msra.mxu0 0
  %441 = vmatprep.subr.bf16.mxu0 0
  %442 = vmatpush2.bf16.msra.mxu0 0
  %443 = vmatprep.mubr.bf16.mxu0 0
  %444 = vmatmul.mubr.bf16.gmra.mxu0 %v103
  %v445 = vpop.f32.mrf.mxu0
  %v446 = vadd.f32 %v409, %v445
  %v447 = vpop.f32.mrf.mxu0
  %v448 = vpop.f32.mrf.mxu0
  %v449 = vadd.f32 %v409, %v448
  %v450 = vpop.f32.mrf.mxu0
  %451 = vmatprep.mubr.bf16.mxu0 0
  %452 = vmatmul.mubr.bf16.gmra.mxu0 %v106
  %v453 = vpop.f32.mrf.mxu0
  %v454 = vadd.f32 %v409, %v453
  %v455 = vpop.f32.mrf.mxu0
  %v456 = vpop.f32.mrf.mxu0
  %v457 = vadd.f32 %v409, %v456
  %v458 = vpop.f32.mrf.mxu0
  %459 = vmatprep.mubr.bf16.mxu0 0
  %460 = vmatmul.mubr.bf16.gmra.mxu0 %v109
  %v461 = vpop.f32.mrf.mxu0
  %v462 = vadd.f32 %v409, %v461
  %v463 = vpop.f32.mrf.mxu0
  %v464 = vpop.f32.mrf.mxu0
  %v465 = vadd.f32 %v409, %v464
  %v466 = vpop.f32.mrf.mxu0
  %467 = vmatprep.mubr.bf16.mxu0 0
  %468 = vmatmul.mubr.bf16.gmra.mxu0 %v112
  %v469 = vpop.f32.mrf.mxu0
  %v470 = vadd.f32 %v409, %v469
  %v471 = vpop.f32.mrf.mxu0
  %v472 = vpop.f32.mrf.mxu0
  %v473 = vadd.f32 %v409, %v472
  %v474 = vpop.f32.mrf.mxu0
  %475 = vdwg.mxu0
  %v476 = vmax.f32 %v446, 0.0
  %v477 = vmax.f32 %v449, 0.0
  %v478 = vmax.f32 %v454, 0.0
  %v479 = vmax.f32 %v457, 0.0
  %v480 = vmax.f32 %v462, 0.0
  %v481 = vmax.f32 %v465, 0.0
  %v482 = vmax.f32 %v470, 0.0
  %v483 = vmax.f32 %v473, 0.0
  %v484 = vpack.c.bf16 %v477, %v476
  %v485 = vpack.c.bf16 %v479, %v478
  %v486 = vpack.c.bf16 %v481, %v480
  %v487 = vpack.c.bf16 %v483, %v482
  %v488 = vld [vmem:[%s6] sm:$0xf]
  %v489 = vld [vmem:[%s6 + $0x4] sm:$0xf]
  %v490 = vld [vmem:[%s6 + $0x8] sm:$0xf]
  %v491 = vld [vmem:[%s6 + $0xc] sm:$0xf]
  %v492 = vld [vmem:[%s6 + $0x10] sm:$0xf]
  %v493 = vld [vmem:[%s6 + $0x14] sm:$0xf]
  %v494 = vld [vmem:[%s6 + $0x18] sm:$0xf]
  %v495 = vld [vmem:[%s6 + $0x1c] sm:$0xf]
  %v496 = vld [vmem:[%s7] sm:$0x1]
  %v505 = vunpack.c.l.b16 %v488
  %v506 = vunpack.c.l.b16 %v489
  %v507 = vunpack.c.l.b16 %v490
  %v508 = vunpack.c.l.b16 %v491
  %v509 = vunpack.c.l.b16 %v492
  %v510 = vunpack.c.l.b16 %v493
  %v511 = vunpack.c.l.b16 %v494
  %v512 = vunpack.c.l.b16 %v495
  %v513 = vpack.c.b16 %v506, %v505
  %v514 = vpack.c.b16 %v508, %v507
  %v515 = vpack.c.b16 %v510, %v509
  %v516 = vpack.c.b16 %v512, %v511
  %v522 = vsel %vm101, %v484, 0
  %v525 = vsel %vm101, %v485, 0
  %v528 = vsel %vm101, %v486, 0
  %v531 = vsel %vm101, %v487, 0
  %533 = vmatprep.subr.bf16.mxu0 0
  %534 = vmatpush1.bf16.msra.mxu0 0
  %535 = vmatprep.subr.bf16.mxu0 0
  %536 = vmatpush1.bf16.msra.mxu0 0
  %537 = vmatprep.subr.bf16.mxu0 0
  %538 = vmatpush1.bf16.msra.mxu0 0
  %539 = vmatprep.subr.bf16.mxu0 0
  %540 = vmatpush1.bf16.msra.mxu0 0
  %541 = vmatprep.subr.bf16.mxu0 0
  %542 = vmatpush1.bf16.msra.mxu0 %v516
  %543 = vmatprep.subr.bf16.mxu0 0
  %544 = vmatpush1.bf16.msra.mxu0 %v515
  %545 = vmatprep.subr.bf16.mxu0 0
  %546 = vmatpush1.bf16.msra.mxu0 %v514
  %547 = vmatprep.subr.bf16.mxu0 0
  %548 = vmatpush1.bf16.msra.mxu0 %v513
  %549 = vmatprep.subr.bf16.mxu0 0
  %550 = vmatpush2.bf16.msra.mxu0 0
  %551 = vmatprep.subr.bf16.mxu0 0
  %552 = vmatpush2.bf16.msra.mxu0 0
  %553 = vmatprep.subr.bf16.mxu0 0
  %554 = vmatpush2.bf16.msra.mxu0 0
  %555 = vmatprep.subr.bf16.mxu0 0
  %556 = vmatpush2.bf16.msra.mxu0 0
  %557 = vmatprep.subr.bf16.mxu0 0
  %558 = vmatpush2.bf16.msra.mxu0 0
  %559 = vmatprep.subr.bf16.mxu0 0
  %560 = vmatpush2.bf16.msra.mxu0 0
  %561 = vmatprep.subr.bf16.mxu0 0
  %562 = vmatpush2.bf16.msra.mxu0 0
  %563 = vmatprep.subr.bf16.mxu0 0
  %564 = vmatpush2.bf16.msra.mxu0 0
  %565 = vmatprep.mubr.bf16.mxu0 0
  %566 = vmatmul.mubr.bf16.gmra.mxu0 %v522
  %v567 = vpop.f32.mrf.mxu0
  %v568 = vadd.f32 0.0, %v567
  %v569 = vpop.f32.mrf.mxu0
  %v570 = vpop.f32.mrf.mxu0
  %v571 = vadd.f32 0.0, %v570
  %v572 = vpop.f32.mrf.mxu0
  %573 = vmatprep.mubr.bf16.mxu0 0
  %574 = vmatmul.mubr.bf16.gmra.mxu0 %v525
  %v575 = vpop.f32.mrf.mxu0
  %v576 = vadd.f32 0.0, %v575
  %v577 = vpop.f32.mrf.mxu0
  %v578 = vpop.f32.mrf.mxu0
  %v579 = vadd.f32 0.0, %v578
  %v580 = vpop.f32.mrf.mxu0
  %581 = vmatprep.mubr.bf16.mxu0 0
  %582 = vmatmul.mubr.bf16.gmra.mxu0 %v528
  %v583 = vpop.f32.mrf.mxu0
  %v584 = vadd.f32 0.0, %v583
  %v585 = vpop.f32.mrf.mxu0
  %v586 = vpop.f32.mrf.mxu0
  %v587 = vadd.f32 0.0, %v586
  %v588 = vpop.f32.mrf.mxu0
  %589 = vmatprep.mubr.bf16.mxu0 0
  %590 = vmatmul.mubr.bf16.gmra.mxu0 %v531
  %v591 = vpop.f32.mrf.mxu0
  %v592 = vadd.f32 0.0, %v591
  %v593 = vpop.f32.mrf.mxu0
  %v594 = vpop.f32.mrf.mxu0
  %v595 = vadd.f32 0.0, %v594
  %v596 = vpop.f32.mrf.mxu0
  %597 = vdwg.mxu0
  %v598 = vpack.c.bf16 %v571, %v568
  %v599 = vpack.c.bf16 %v579, %v576
  %v600 = vpack.c.bf16 %v587, %v584
  %v601 = vpack.c.bf16 %v595, %v592
  %v603 = vlaneseq
  %v604 = vshrl.u32 %v603, 7
  %v605 = vsub.s32 0, %v604
  %v606 = vrot.slane %v496, %v605
  %608 = vmatprep.subr.bf16.mxu0 0
  %609 = vmatpush1.bf16.msra.mxu0 0
  %610 = vmatprep.subr.bf16.mxu0 0
  %611 = vmatpush1.bf16.msra.mxu0 0
  %612 = vmatprep.subr.bf16.mxu0 0
  %613 = vmatpush1.bf16.msra.mxu0 0
  %614 = vmatprep.subr.bf16.mxu0 0
  %615 = vmatpush1.bf16.msra.mxu0 0
  %616 = vmatprep.subr.bf16.mxu0 0
  %617 = vmatpush1.bf16.msra.mxu0 %v601
  %618 = vmatprep.subr.bf16.mxu0 0
  %619 = vmatpush1.bf16.msra.mxu0 %v600
  %620 = vmatprep.subr.bf16.mxu0 0
  %621 = vmatpush1.bf16.msra.mxu0 %v599
  %622 = vmatprep.subr.bf16.mxu0 0
  %623 = vmatpush1.bf16.msra.mxu0 %v598
  %624 = vmatprep.subr.bf16.mxu0 0
  %625 = vmatpush2.bf16.msra.mxu0 0
  %626 = vmatprep.subr.bf16.mxu0 0
  %627 = vmatpush2.bf16.msra.mxu0 0
  %628 = vmatprep.subr.bf16.mxu0 0
  %629 = vmatpush2.bf16.msra.mxu0 0
  %630 = vmatprep.subr.bf16.mxu0 0
  %631 = vmatpush2.bf16.msra.mxu0 0
  %632 = vmatprep.subr.bf16.mxu0 0
  %633 = vmatpush2.bf16.msra.mxu0 0
  %634 = vmatprep.subr.bf16.mxu0 0
  %635 = vmatpush2.bf16.msra.mxu0 0
  %636 = vmatprep.subr.bf16.mxu0 0
  %637 = vmatpush2.bf16.msra.mxu0 0
  %638 = vmatprep.subr.bf16.mxu0 0
  %639 = vmatpush2.bf16.msra.mxu0 0
  %640 = vmatprep.mubr.bf16.mxu0 0
  %641 = vmatmul.mubr.bf16.gmra.mxu0 %v103
  %v642 = vpop.f32.mrf.mxu0
  %v643 = vadd.f32 %v606, %v642
  %v644 = vpop.f32.mrf.mxu0
  %v645 = vpop.f32.mrf.mxu0
  %v646 = vadd.f32 %v606, %v645
  %v647 = vpop.f32.mrf.mxu0
  %648 = vmatprep.mubr.bf16.mxu0 0
  %649 = vmatmul.mubr.bf16.gmra.mxu0 %v106
  %v650 = vpop.f32.mrf.mxu0
  %v651 = vadd.f32 %v606, %v650
  %v652 = vpop.f32.mrf.mxu0
  %v653 = vpop.f32.mrf.mxu0
  %v654 = vadd.f32 %v606, %v653
  %v655 = vpop.f32.mrf.mxu0
  %656 = vmatprep.mubr.bf16.mxu0 0
  %657 = vmatmul.mubr.bf16.gmra.mxu0 %v109
  %v658 = vpop.f32.mrf.mxu0
  %v659 = vadd.f32 %v606, %v658
  %v660 = vpop.f32.mrf.mxu0
  %v661 = vpop.f32.mrf.mxu0
  %v662 = vadd.f32 %v606, %v661
  %v663 = vpop.f32.mrf.mxu0
  %664 = vmatprep.mubr.bf16.mxu0 0
  %665 = vmatmul.mubr.bf16.gmra.mxu0 %v112
  %v666 = vpop.f32.mrf.mxu0
  %v667 = vadd.f32 %v606, %v666
  %v668 = vpop.f32.mrf.mxu0
  %v669 = vpop.f32.mrf.mxu0
  %v670 = vadd.f32 %v606, %v669
  %v671 = vpop.f32.mrf.mxu0
  %672 = vdwg.mxu0
  %v673 = vmax.f32 %v643, 0.0
  %v674 = vmax.f32 %v646, 0.0
  %v675 = vmax.f32 %v651, 0.0
  %v676 = vmax.f32 %v654, 0.0
  %v677 = vmax.f32 %v659, 0.0
  %v678 = vmax.f32 %v662, 0.0
  %v679 = vmax.f32 %v667, 0.0
  %v680 = vmax.f32 %v670, 0.0
  %v681 = vpack.c.bf16 %v674, %v673
  %v682 = vpack.c.bf16 %v676, %v675
  %v683 = vpack.c.bf16 %v678, %v677
  %v684 = vpack.c.bf16 %v680, %v679
  %v685 = vld [vmem:[%s8] sm:$0xf]
  %v686 = vld [vmem:[%s8 + $0x4] sm:$0xf]
  %v687 = vld [vmem:[%s8 + $0x8] sm:$0xf]
  %v688 = vld [vmem:[%s8 + $0xc] sm:$0xf]
  %v689 = vld [vmem:[%s8 + $0x10] sm:$0xf]
  %v690 = vld [vmem:[%s8 + $0x14] sm:$0xf]
  %v691 = vld [vmem:[%s8 + $0x18] sm:$0xf]
  %v692 = vld [vmem:[%s8 + $0x1c] sm:$0xf]
  %v693 = vld [vmem:[%s9] sm:$0x1]
  %694 = vmatprep.subr.bf16.mxu0 0
  %695 = vmatpush1.bf16.msra.mxu0 0
  %696 = vmatprep.subr.bf16.mxu0 0
  %697 = vmatpush1.bf16.msra.mxu0 0
  %698 = vmatprep.subr.bf16.mxu0 0
  %699 = vmatpush1.bf16.msra.mxu0 0
  %700 = vmatprep.subr.bf16.mxu0 0
  %701 = vmatpush1.bf16.msra.mxu0 0
  %702 = vmatprep.subr.bf16.mxu0 0
  %703 = vmatpush1.bf16.msra.mxu0 %v684
  %704 = vmatprep.subr.bf16.mxu0 0
  %705 = vmatpush1.bf16.msra.mxu0 %v683
  %706 = vmatprep.subr.bf16.mxu0 0
  %707 = vmatpush1.bf16.msra.mxu0 %v682
  %708 = vmatprep.subr.bf16.mxu0 0
  %709 = vmatpush1.bf16.msra.mxu0 %v681
  %710 = vmatprep.subr.bf16.mxu0 0
  %711 = vmatpush2.bf16.msra.mxu0 0
  %712 = vmatprep.subr.bf16.mxu0 0
  %713 = vmatpush2.bf16.msra.mxu0 0
  %714 = vmatprep.subr.bf16.mxu0 0
  %715 = vmatpush2.bf16.msra.mxu0 0
  %716 = vmatprep.subr.bf16.mxu0 0
  %717 = vmatpush2.bf16.msra.mxu0 0
  %718 = vmatprep.subr.bf16.mxu0 0
  %719 = vmatpush2.bf16.msra.mxu0 0
  %720 = vmatprep.subr.bf16.mxu0 0
  %721 = vmatpush2.bf16.msra.mxu0 0
  %722 = vmatprep.subr.bf16.mxu0 0
  %723 = vmatpush2.bf16.msra.mxu0 0
  %724 = vmatprep.subr.bf16.mxu0 0
  %725 = vmatpush2.bf16.msra.mxu0 0
  %726 = vmatprep.mubr.bf16.mxu0 0
  %727 = vmatmul.mubr.bf16.gmra.mxu0 %v103
  %v728 = vpop.f32.mrf.mxu0
  %v729 = vadd.f32 0.0, %v728
  %v730 = vpop.f32.mrf.mxu0
  %v731 = vpop.f32.mrf.mxu0
  %v732 = vadd.f32 0.0, %v731
  %v733 = vpop.f32.mrf.mxu0
  %734 = vmatprep.mubr.bf16.mxu0 0
  %735 = vmatmul.mubr.bf16.gmra.mxu0 %v106
  %v736 = vpop.f32.mrf.mxu0
  %v737 = vadd.f32 0.0, %v736
  %v738 = vpop.f32.mrf.mxu0
  %v739 = vpop.f32.mrf.mxu0
  %v740 = vadd.f32 0.0, %v739
  %v741 = vpop.f32.mrf.mxu0
  %742 = vmatprep.mubr.bf16.mxu0 0
  %743 = vmatmul.mubr.bf16.gmra.mxu0 %v109
  %v744 = vpop.f32.mrf.mxu0
  %v745 = vadd.f32 0.0, %v744
  %v746 = vpop.f32.mrf.mxu0
  %v747 = vpop.f32.mrf.mxu0
  %v748 = vadd.f32 0.0, %v747
  %v749 = vpop.f32.mrf.mxu0
  %750 = vmatprep.mubr.bf16.mxu0 0
  %751 = vmatmul.mubr.bf16.gmra.mxu0 %v112
  %v752 = vpop.f32.mrf.mxu0
  %v753 = vadd.f32 0.0, %v752
  %v754 = vpop.f32.mrf.mxu0
  %v755 = vpop.f32.mrf.mxu0
  %v756 = vadd.f32 0.0, %v755
  %v757 = vpop.f32.mrf.mxu0
  %758 = vdwg.mxu0
  %v759 = vpack.c.bf16 %v732, %v729
  %v760 = vpack.c.bf16 %v740, %v737
  %v761 = vpack.c.bf16 %v748, %v745
  %v762 = vpack.c.bf16 %v756, %v753
  %v764 = vlaneseq
  %v765 = vshrl.u32 %v764, 7
  %v766 = vsub.s32 0, %v765
  %v767 = vrot.slane %v693, %v766
  %v777 = vunpack.c.l.b16 %v685
  %v778 = vunpack.c.l.b16 %v686
  %v779 = vunpack.c.l.b16 %v687
  %v780 = vunpack.c.l.b16 %v688
  %v781 = vunpack.c.l.b16 %v689
  %v782 = vunpack.c.l.b16 %v690
  %v783 = vunpack.c.l.b16 %v691
  %v784 = vunpack.c.l.b16 %v692
  %v785 = vpack.c.b16 %v778, %v777
  %v786 = vpack.c.b16 %v780, %v779
  %v787 = vpack.c.b16 %v782, %v781
  %v788 = vpack.c.b16 %v784, %v783
  %v794 = vsel %vm101, %v759, 0
  %v797 = vsel %vm101, %v760, 0
  %v800 = vsel %vm101, %v761, 0
  %v803 = vsel %vm101, %v762, 0
  %805 = vmatprep.subr.bf16.mxu0 0
  %806 = vmatpush1.bf16.msra.mxu0 0
  %807 = vmatprep.subr.bf16.mxu0 0
  %808 = vmatpush1.bf16.msra.mxu0 0
  %809 = vmatprep.subr.bf16.mxu0 0
  %810 = vmatpush1.bf16.msra.mxu0 0
  %811 = vmatprep.subr.bf16.mxu0 0
  %812 = vmatpush1.bf16.msra.mxu0 0
  %813 = vmatprep.subr.bf16.mxu0 0
  %814 = vmatpush1.bf16.msra.mxu0 %v788
  %815 = vmatprep.subr.bf16.mxu0 0
  %816 = vmatpush1.bf16.msra.mxu0 %v787
  %817 = vmatprep.subr.bf16.mxu0 0
  %818 = vmatpush1.bf16.msra.mxu0 %v786
  %819 = vmatprep.subr.bf16.mxu0 0
  %820 = vmatpush1.bf16.msra.mxu0 %v785
  %821 = vmatprep.subr.bf16.mxu0 0
  %822 = vmatpush2.bf16.msra.mxu0 0
  %823 = vmatprep.subr.bf16.mxu0 0
  %824 = vmatpush2.bf16.msra.mxu0 0
  %825 = vmatprep.subr.bf16.mxu0 0
  %826 = vmatpush2.bf16.msra.mxu0 0
  %827 = vmatprep.subr.bf16.mxu0 0
  %828 = vmatpush2.bf16.msra.mxu0 0
  %829 = vmatprep.subr.bf16.mxu0 0
  %830 = vmatpush2.bf16.msra.mxu0 0
  %831 = vmatprep.subr.bf16.mxu0 0
  %832 = vmatpush2.bf16.msra.mxu0 0
  %833 = vmatprep.subr.bf16.mxu0 0
  %834 = vmatpush2.bf16.msra.mxu0 0
  %835 = vmatprep.subr.bf16.mxu0 0
  %836 = vmatpush2.bf16.msra.mxu0 0
  %837 = vmatprep.mubr.bf16.mxu0 0
  %838 = vmatmul.mubr.bf16.gmra.mxu0 %v794
  %v839 = vpop.f32.mrf.mxu0
  %v840 = vadd.f32 %v767, %v839
  %v841 = vpop.f32.mrf.mxu0
  %v842 = vpop.f32.mrf.mxu0
  %v843 = vadd.f32 %v767, %v842
  %v844 = vpop.f32.mrf.mxu0
  %845 = vmatprep.mubr.bf16.mxu0 0
  %846 = vmatmul.mubr.bf16.gmra.mxu0 %v797
  %v847 = vpop.f32.mrf.mxu0
  %v848 = vadd.f32 %v767, %v847
  %v849 = vpop.f32.mrf.mxu0
  %v850 = vpop.f32.mrf.mxu0
  %v851 = vadd.f32 %v767, %v850
  %v852 = vpop.f32.mrf.mxu0
  %853 = vmatprep.mubr.bf16.mxu0 0
  %854 = vmatmul.mubr.bf16.gmra.mxu0 %v800
  %v855 = vpop.f32.mrf.mxu0
  %v856 = vadd.f32 %v767, %v855
  %v857 = vpop.f32.mrf.mxu0
  %v858 = vpop.f32.mrf.mxu0
  %v859 = vadd.f32 %v767, %v858
  %v860 = vpop.f32.mrf.mxu0
  %861 = vmatprep.mubr.bf16.mxu0 0
  %862 = vmatmul.mubr.bf16.gmra.mxu0 %v803
  %v863 = vpop.f32.mrf.mxu0
  %v864 = vadd.f32 %v767, %v863
  %v865 = vpop.f32.mrf.mxu0
  %v866 = vpop.f32.mrf.mxu0
  %v867 = vadd.f32 %v767, %v866
  %v868 = vpop.f32.mrf.mxu0
  %869 = vdwg.mxu0
  %870 = vmax.xlane.f32.xlu0 %v840
  %v871 = vpop.xlane.xlu0 %870
  %872 = vmax.xlane.f32.xlu0 %v843
  %v873 = vpop.xlane.xlu0 %872
  %874 = vmax.xlane.f32.xlu0 %v848
  %v875 = vpop.xlane.xlu0 %874
  %876 = vmax.xlane.f32.xlu0 %v851
  %v877 = vpop.xlane.xlu0 %876
  %878 = vmax.xlane.f32.xlu0 %v856
  %v879 = vpop.xlane.xlu0 %878
  %880 = vmax.xlane.f32.xlu0 %v859
  %v881 = vpop.xlane.xlu0 %880
  %882 = vmax.xlane.f32.xlu0 %v864
  %v883 = vpop.xlane.xlu0 %882
  %884 = vmax.xlane.f32.xlu0 %v867
  %v885 = vpop.xlane.xlu0 %884
  %v886 = vsub.f32 %v840, %v871
  %v887 = vsub.f32 %v843, %v873
  %v888 = vsub.f32 %v848, %v875
  %v889 = vsub.f32 %v851, %v877
  %v890 = vsub.f32 %v856, %v879
  %v891 = vsub.f32 %v859, %v881
  %v892 = vsub.f32 %v864, %v883
  %v893 = vsub.f32 %v867, %v885
  %v894 = vmul.f32 %v886, 1.442695
  %v895 = vpow.pop %v894
  %v896 = vmul.f32 %v887, 1.442695
  %v897 = vpow.pop %v896
  %v898 = vmul.f32 %v888, 1.442695
  %v899 = vpow.pop %v898
  %v900 = vmul.f32 %v889, 1.442695
  %v901 = vpow.pop %v900
  %v902 = vmul.f32 %v890, 1.442695
  %v903 = vpow.pop %v902
  %v904 = vmul.f32 %v891, 1.442695
  %v905 = vpow.pop %v904
  %v906 = vmul.f32 %v892, 1.442695
  %v907 = vpow.pop %v906
  %v908 = vmul.f32 %v893, 1.442695
  %v909 = vpow.pop %v908
  %910 = vadd.xlane.f32.xlu0 %v895
  %v911 = vpop.xlane.xlu0 %910
  %912 = vadd.xlane.f32.xlu0 %v897
  %v913 = vpop.xlane.xlu0 %912
  %914 = vadd.xlane.f32.xlu0 %v899
  %v915 = vpop.xlane.xlu0 %914
  %916 = vadd.xlane.f32.xlu0 %v901
  %v917 = vpop.xlane.xlu0 %916
  %918 = vadd.xlane.f32.xlu0 %v903
  %v919 = vpop.xlane.xlu0 %918
  %920 = vadd.xlane.f32.xlu0 %v905
  %v921 = vpop.xlane.xlu0 %920
  %922 = vadd.xlane.f32.xlu0 %v907
  %v923 = vpop.xlane.xlu0 %922
  %924 = vadd.xlane.f32.xlu0 %v909
  %v925 = vpop.xlane.xlu0 %924
  %v926 = vlog2.pop %v911
  %v927 = vmul.f32 %v926, 0.6931472
  %v928 = vlog2.pop %v913
  %v929 = vmul.f32 %v928, 0.6931472
  %v930 = vlog2.pop %v915
  %v931 = vmul.f32 %v930, 0.6931472
  %v932 = vlog2.pop %v917
  %v933 = vmul.f32 %v932, 0.6931472
  %v934 = vlog2.pop %v919
  %v935 = vmul.f32 %v934, 0.6931472
  %v936 = vlog2.pop %v921
  %v937 = vmul.f32 %v936, 0.6931472
  %v938 = vlog2.pop %v923
  %v939 = vmul.f32 %v938, 0.6931472
  %v940 = vlog2.pop %v925
  %v941 = vmul.f32 %v940, 0.6931472
  %v942 = vsub.f32 %v886, %v927
  %v943 = vsub.f32 %v887, %v929
  %v944 = vsub.f32 %v888, %v931
  %v945 = vsub.f32 %v889, %v933
  %v946 = vsub.f32 %v890, %v935
  %v947 = vsub.f32 %v891, %v937
  %v948 = vsub.f32 %v892, %v939
  %v949 = vsub.f32 %v893, %v941
  %950 = vst [vmem:[%s10] sm:$0xff] %v942
  %951 = vst [vmem:[%s10 + $0x8] sm:$0xff] %v943
  %952 = vst [vmem:[%s10 + $0x10] sm:$0xff] %v944
  %953 = vst [vmem:[%s10 + $0x18] sm:$0xff] %v945
  %954 = vst [vmem:[%s10 + $0x20] sm:$0xff] %v946
  %955 = vst [vmem:[%s10 + $0x28] sm:$0xff] %v947
  %956 = vst [vmem:[%s10 + $0x30] sm:$0xff] %v948
  %957 = vst [vmem:[%s10 + $0x38] sm:$0xff] %v949
  // Predicated region
  $region42: #{gcn_forward.1} parent=0 // pred_check
    _
  $region43: #{gcn_forward.1} parent=0 // pred_check_branch
    %959 = sbr.rel (0) target = $region45
  $region44: #{gcn_forward.1} parent=0 // pred_region
    _
  $region45: #{gcn_forward.1} parent=0 // pred_fallthru
    _
  // Predicated region
  $region46: #{gcn_forward.1} parent=0 // pred_check
    _
  $region47: #{gcn_forward.1} parent=0 // pred_check_branch
    %961 = sbr.rel (0) target = $region49
  $region48: #{gcn_forward.1} parent=0 // pred_region
    _
  $region49: #{gcn_forward.1} parent=0 // pred_fallthru
    _

</llo_original>
